<compile_context>
chip_gen: v7x
topology: tpu7x:2x2x1
jax: 0.10.0
libtpu: 0.0.40
codegen_flags: <defaults>
</compile_context>

<pallas_src>
import functools
import math

import jax
import jax.numpy as jnp
import numpy as np
from jax.experimental import pallas as pl
from jax.experimental.pallas import tpu as pltpu

INF = 10000.0


# --------------------------------------------------------------------------
# Kernel A: dense projection (q & k, all heads) + RoPE, per (batch, seq-block)
# --------------------------------------------------------------------------
def _proj_rope_kernel(x_ref, w_ref, b_ref, sin_ref, cos_ref,
                      q_out_ref, k_out_ref, *, heads, head_size, scale):
    hd2 = head_size // 2
    g = heads * hd2
    # (block_s, 4g) = [q_even | q_odd | k_even | k_odd], f32 accumulation.
    proj = jnp.dot(x_ref[0], w_ref[...],
                   preferred_element_type=jnp.float32) + b_ref[...]
    sin = sin_ref[...]                       # (block_s, hd2) f32
    cos = cos_ref[...]
    for h in range(heads):                   # static loop
        o = h * hd2
        q1 = proj[:, o:o + hd2]
        q2 = proj[:, g + o:g + o + hd2]
        k1 = proj[:, 2 * g + o:2 * g + o + hd2]
        k2 = proj[:, 3 * g + o:3 * g + o + hd2]
        # Rotated-halves layout per head: [a | b].  The qk contraction is
        # invariant under this (identical) per-head permutation of dims.
        q_out_ref[0, h, :, :hd2] = ((q1 * cos - q2 * sin) * scale
                                    ).astype(q_out_ref.dtype)
        q_out_ref[0, h, :, hd2:] = ((q1 * sin + q2 * cos) * scale
                                    ).astype(q_out_ref.dtype)
        k_out_ref[0, h, :, :hd2] = (k1 * cos - k2 * sin).astype(k_out_ref.dtype)
        k_out_ref[0, h, :, hd2:] = (k1 * sin + k2 * cos).astype(k_out_ref.dtype)


# --------------------------------------------------------------------------
# Kernel B: batched per-head-group qk logits + additive masks
# --------------------------------------------------------------------------
def _qk_mask_kernel(q_ref, k_ref, mrow_ref, mcol_ref, out_ref, *, inf_scaled):
    qi = pl.program_id(2)
    block_q = q_ref.shape[2]
    S = k_ref.shape[2]
    q = q_ref[0]                             # (hpb, block_q, head_size) bf16
    k = k_ref[0]                             # (hpb, S, head_size) bf16
    logits = jnp.einsum('hqd,hkd->hqk', q, k,
                        preferred_element_type=jnp.float32)  # (hpb, TQ, S)
    km = mrow_ref[0]                         # (1, S)  key mask
    qm = mcol_ref[0]                         # (block_q, 1) query mask
    row = qi * block_q + jax.lax.broadcasted_iota(jnp.int32, (block_q, S), 0)
    col = jax.lax.broadcasted_iota(jnp.int32, (block_q, S), 1)
    tril = (col < row).astype(jnp.float32)   # strictly-lower triangle
    # INF is pre-scaled by 1/sqrt(head_size) because the scale is folded into q.
    neg = ((1.0 - qm * km) + tril) * inf_scaled
    out_ref[0] = (logits - neg[None]).astype(out_ref.dtype)


def _vmem_limit_bytes():
    try:
        cap = int(pltpu.get_tpu_info().vmem_capacity_bytes)
        return min((cap * 3) // 4, 100 * 1024 * 1024)
    except Exception:
        return None     # fall back to the compiler default


def global_pointer_pallas(x, W, b, sin_t, cos_t, attention_mask, heads,
                          head_size, block_q=None, block_s=None,
                          heads_per_block=None, out_dtype=jnp.float32):
    """x:(bs,S,H)  W:(H, heads*2*head_size)  b:(heads*2*head_size,)
       sin_t/cos_t:(max_len, head_size//2)  attention_mask:(bs,S)
       returns logits (bs, heads, S, S) matching the PyTorch GlobalPointer."""
    bs, S, H = x.shape
    assert head_size % 2 == 0
    hd2 = head_size // 2
    g = heads * hd2
    scale = 1.0 / math.sqrt(head_size)

    if block_q is None:
        block_q = S if S <= 512 else 512
    assert S % block_q == 0 and (block_q == S or block_q % 16 == 0)
    n_q = S // block_q

    if block_s is None:
        block_s = S if S <= 512 else 512
    assert S % block_s == 0 and (block_s == S or block_s % 16 == 0)
    n_s = S // block_s

    if heads_per_block is None:
        heads_per_block = 2 if heads % 2 == 0 else 1
    hpb = heads_per_block
    assert heads % hpb == 0
    n_hg = heads // hpb

    # Repack dense params: per-head [even | odd] column groups for q & k,
    # concatenated as [q_even(g) | q_odd(g) | k_even(g) | k_odd(g)].
    Wr = W.reshape(H, heads, 2, head_size)

    def _wcols(t, par):                     # -> (H, g), head-major
        return Wr[:, :, t, par::2].reshape(H, g)

    Wcat = jnp.concatenate(
        [_wcols(0, 0), _wcols(0, 1), _wcols(1, 0), _wcols(1, 1)],
        axis=-1).astype(jnp.bfloat16)

    br = b.reshape(heads, 2, head_size)

    def _bcols(t, par):                     # -> (1, g)
        return br[:, t, par::2].reshape(1, g)

    bcat = jnp.concatenate(
        [_bcols(0, 0), _bcols(0, 1), _bcols(1, 0), _bcols(1, 1)],
        axis=-1).astype(jnp.float32)

    x_bf = x.astype(jnp.bfloat16)
    sin_s = sin_t[:S].astype(jnp.float32)   # (S, hd2) — no heads tiling
    cos_s = cos_t[:S].astype(jnp.float32)

    vmem_limit = _vmem_limit_bytes()

    # ---- Kernel A: projection + RoPE --------------------------------------
    proj_kernel = functools.partial(_proj_rope_kernel, heads=heads,
                                    head_size=head_size, scale=scale)
    rot_shape = jax.ShapeDtypeStruct((bs, heads, S, head_size), jnp.bfloat16)
    q_rot, k_rot = pl.pallas_call(
        proj_kernel,
        out_shape=(rot_shape, rot_shape),
        grid_spec=pltpu.PrefetchScalarGridSpec(
            num_scalar_prefetch=0,
            grid=(bs, n_s),
            in_specs=[
                pl.BlockSpec((1, block_s, H), lambda bi, si: (bi, si, 0)),   # x
                pl.BlockSpec((H, 4 * g), lambda bi, si: (0, 0)),             # W
                pl.BlockSpec((1, 4 * g), lambda bi, si: (0, 0)),             # b
                pl.BlockSpec((block_s, hd2), lambda bi, si: (si, 0)),        # sin
                pl.BlockSpec((block_s, hd2), lambda bi, si: (si, 0)),        # cos
            ],
            out_specs=[
                pl.BlockSpec((1, heads, block_s, head_size),
                             lambda bi, si: (bi, 0, si, 0)),                 # q_rot
                pl.BlockSpec((1, heads, block_s, head_size),
                             lambda bi, si: (bi, 0, si, 0)),                 # k_rot
            ],
        ),
        compiler_params=pltpu.CompilerParams(
            dimension_semantics=("parallel", "parallel"),
            vmem_limit_bytes=vmem_limit),
    )(x_bf, Wcat, bcat, sin_s, cos_s)

    # ---- Kernel B: qk logits + masks ---------------------------------------
    am = attention_mask.astype(jnp.float32)
    mrow = am.reshape(bs, 1, S)             # key mask   (broadcast over rows)
    mcol = am.reshape(bs, S, 1)             # query mask (broadcast over cols)

    qk_kernel = functools.partial(_qk_mask_kernel, inf_scaled=INF * scale)
    return pl.pallas_call(
        qk_kernel,
        out_shape=jax.ShapeDtypeStruct((bs, heads, S, S), out_dtype),
        grid_spec=pltpu.PrefetchScalarGridSpec(
            num_scalar_prefetch=0,
            grid=(bs, n_hg, n_q),           # q innermost -> k block reused
            in_specs=[
                pl.BlockSpec((1, hpb, block_q, head_size),
                             lambda bi, hg, qi: (bi, hg, qi, 0)),            # q_rot
                pl.BlockSpec((1, hpb, S, head_size),
                             lambda bi, hg, qi: (bi, hg, 0, 0)),             # k_rot
                pl.BlockSpec((1, 1, S), lambda bi, hg, qi: (bi, 0, 0)),      # mrow
                pl.BlockSpec((1, block_q, 1), lambda bi, hg, qi: (bi, qi, 0)),  # mcol
            ],
            out_specs=pl.BlockSpec((1, hpb, block_q, S),
                                   lambda bi, hg, qi: (bi, hg, qi, 0)),
        ),
        compiler_params=pltpu.CompilerParams(
            dimension_semantics=("parallel", "parallel", "parallel"),
            vmem_limit_bytes=vmem_limit),
    )(q_rot, k_rot, mrow, mcol)


# --------------------------------------------------------------------------
# Pure-JAX reference (mirror of the PyTorch GlobalPointer.forward semantics)
# --------------------------------------------------------------------------
def reference_jax(x, W, b, sin_t, cos_t, attention_mask, heads, head_size):
    bs, S, H = x.shape
    proj = x @ W + b
    proj = proj.reshape(bs, S, heads, 2, head_size)
    qw, kw = proj[..., 0, :], proj[..., 1, :]
    sin = sin_t[:S][:, None, :]             # unsqueeze_dim=1 -> (S, 1, hd2)
    cos = cos_t[:S][:, None, :]

    def rope(t):
        t1, t2 = t[..., 0::2], t[..., 1::2]
        out = jnp.stack([t1 * cos - t2 * sin, t1 * sin + t2 * cos], axis=-1)
        return out.reshape(t.shape)

    qw, kw = rope(qw), rope(kw)
    logits = jnp.einsum('bmhd,bnhd->bhmn', qw, kw)
    am = attention_mask.astype(jnp.float32)
    attn_mask = 1.0 - am[:, None, None, :] * am[:, None, :, None]
    logits = logits - attn_mask * INF
    tril = jnp.tril(jnp.ones((S, S), jnp.float32), k=-1)
    logits = logits - tril * INF
    return logits / math.sqrt(head_size)


def _run_case(bs, S, H, heads, head_size, max_len, block_q):
    key = jax.random.PRNGKey(0)
    k1, k2, k3 = jax.random.split(key, 3)
    x = jax.random.normal(k1, (bs, S, H), jnp.float32)
    W = jax.random.normal(k2, (H, heads * 2 * head_size), jnp.float32) * 0.05
    b = jax.random.normal(k3, (heads * 2 * head_size,), jnp.float32) * 0.05
    # deterministic padding mask: full length for batch 0, S-2 for batch 1
    lens = jnp.array([S, S - 2], jnp.int32)[:bs]
    attention_mask = (jnp.arange(S)[None, :] < lens[:, None]).astype(jnp.float32)

    # RotaryPositionEmbedding buffers (deterministic, computed in-script)
    inv_freq = 1.0 / (10000.0 ** (
        jnp.arange(0, head_size, 2, dtype=jnp.float32) / head_size))
    t = jnp.arange(max_len, dtype=jnp.float32)
    freqs = jnp.einsum('n,d->nd', t, inv_freq)
    sin_t, cos_t = jnp.sin(freqs), jnp.cos(freqs)

    out = global_pointer_pallas(x, W, b, sin_t, cos_t, attention_mask, heads,
                                head_size, block_q=block_q)
    jax.block_until_ready(out)
    ref = reference_jax(x, W, b, sin_t, cos_t, attention_mask, heads, head_size)
    # bf16 MXU inputs (f32 accumulation) -> loosened tolerance vs f32 reference
    np.testing.assert_allclose(np.asarray(out), np.asarray(ref),
                               rtol=2e-2, atol=2e-2)


if __name__ == "__main__":
    # single q-block / single head-group-per-step path (hpb=2, 2 groups)
    _run_case(bs=2, S=8, H=32, heads=4, head_size=32, max_len=64, block_q=None)
    # multi q-block (tiled output) + multi head-group path
    _run_case(bs=2, S=32, H=32, heads=4, head_size=32, max_len=64, block_q=16)
    print("KERNEL_OK")
</pallas_src>

<mosaic_0001>
module attributes {stable_mosaic.version = 11 : i64} {
  func.func @_proj_rope_kernel(%arg0: i32, %arg1: i32, %arg2: memref<1x8x32xbf16, #tpu.memory_space<vmem>>, %arg3: memref<32x256xbf16, #tpu.memory_space<vmem>>, %arg4: memref<1x256xf32, #tpu.memory_space<vmem>>, %arg5: memref<8x16xf32, #tpu.memory_space<vmem>>, %arg6: memref<8x16xf32, #tpu.memory_space<vmem>>, %arg7: memref<1x4x8x32xbf16, #tpu.memory_space<vmem>>, %arg8: memref<1x4x8x32xbf16, #tpu.memory_space<vmem>>) attributes {dimension_semantics = [#tpu.dimension_semantics<parallel>, #tpu.dimension_semantics<parallel>], iteration_bounds = array<i64: 2, 1>, scalar_prefetch = 0 : i64, scratch_operands = 0 : i64, tpu.core_type = #tpu.core_type<tc>, window_params = [{transform_indices = @transform_0, window_bounds = array<i64: 1, 8, 32>}, {pipeline_mode = #tpu.pipeline_mode<synchronous>, transform_indices = @transform_1, window_bounds = array<i64: 32, 256>}, {pipeline_mode = #tpu.pipeline_mode<synchronous>, transform_indices = @transform_2, window_bounds = array<i64: 1, 256>}, {transform_indices = @transform_3, window_bounds = array<i64: 8, 16>}, {transform_indices = @transform_4, window_bounds = array<i64: 8, 16>}, {transform_indices = @transform_5, window_bounds = array<i64: 1, 4, 8, 32>}, {transform_indices = @transform_6, window_bounds = array<i64: 1, 4, 8, 32>}]} {
    %c0 = arith.constant 0 : index
    %c0_0 = arith.constant 0 : index
    %c0_1 = arith.constant 0 : index
    %0 = vector.load %arg2[%c0, %c0_0, %c0_1] : memref<1x8x32xbf16, #tpu.memory_space<vmem>>, vector<1x8x32xbf16>
    %1 = vector.shape_cast %0 : vector<1x8x32xbf16> to vector<8x32xbf16>
    %c0_2 = arith.constant 0 : index
    %c0_3 = arith.constant 0 : index
    %2 = vector.load %arg3[%c0_2, %c0_3] : memref<32x256xbf16, #tpu.memory_space<vmem>>, vector<32x256xbf16>
    %cst = arith.constant dense<0.000000e+00> : vector<8x256xf32>
    %3 = tpu.matmul %1, %2, %cst {dimension_numbers = #tpu.dot_dimension_numbers<[1], [0], [0], [1], [0, 0, 1, 1], [], []>} : vector<8x32xbf16>, vector<32x256xbf16>, vector<8x256xf32> -> vector<8x256xf32>
    %c0_4 = arith.constant 0 : index
    %c0_5 = arith.constant 0 : index
    %4 = vector.load %arg4[%c0_4, %c0_5] : memref<1x256xf32, #tpu.memory_space<vmem>>, vector<1x256xf32>
    %5 = vector.broadcast %4 : vector<1x256xf32> to vector<8x256xf32>
    %6 = arith.addf %3, %5 : vector<8x256xf32>
    %c0_6 = arith.constant 0 : index
    %c0_7 = arith.constant 0 : index
    %7 = vector.load %arg5[%c0_6, %c0_7] : memref<8x16xf32, #tpu.memory_space<vmem>>, vector<8x16xf32>
    %c0_8 = arith.constant 0 : index
    %c0_9 = arith.constant 0 : index
    %8 = vector.load %arg6[%c0_8, %c0_9] : memref<8x16xf32, #tpu.memory_space<vmem>>, vector<8x16xf32>
    %9 = vector.extract_strided_slice %6 {offsets = [0, 0], sizes = [8, 16], strides = [1, 1]} : vector<8x256xf32> to vector<8x16xf32>
    %10 = vector.extract_strided_slice %6 {offsets = [0, 64], sizes = [8, 16], strides = [1, 1]} : vector<8x256xf32> to vector<8x16xf32>
    %11 = vector.extract_strided_slice %6 {offsets = [0, 128], sizes = [8, 16], strides = [1, 1]} : vector<8x256xf32> to vector<8x16xf32>
    %12 = vector.extract_strided_slice %6 {offsets = [0, 192], sizes = [8, 16], strides = [1, 1]} : vector<8x256xf32> to vector<8x16xf32>
    %13 = arith.mulf %9, %8 : vector<8x16xf32>
    %14 = arith.mulf %10, %7 : vector<8x16xf32>
    %15 = arith.subf %13, %14 : vector<8x16xf32>
    %cst_10 = arith.constant 0.176776692 : f32
    %16 = vector.broadcast %cst_10 : f32 to vector<8x16xf32>
    %17 = arith.mulf %15, %16 : vector<8x16xf32>
    %18 = arith.truncf %17 : vector<8x16xf32> to vector<8x16xbf16>
    %c0_11 = arith.constant 0 : index
    %c0_12 = arith.constant 0 : index
    %c0_13 = arith.constant 0 : index
    %c0_14 = arith.constant 0 : index
    %19 = vector.load %arg7[%c0_11, %c0_12, %c0_13, %c0_14] : memref<1x4x8x32xbf16, #tpu.memory_space<vmem>>, vector<1x1x8x16xbf16>
    %20 = vector.shape_cast %19 : vector<1x1x8x16xbf16> to vector<8x16xbf16>
    %21 = vector.shape_cast %18 : vector<8x16xbf16> to vector<1x1x8x16xbf16>
    tpu.vector_store %arg7[%c0_11, %c0_12, %c0_13, %c0_14], %21 {strides = array<i32>} : memref<1x4x8x32xbf16, #tpu.memory_space<vmem>>, vector<1x1x8x16xbf16>,
    %22 = arith.mulf %9, %7 : vector<8x16xf32>
    %23 = arith.mulf %10, %8 : vector<8x16xf32>
    %24 = arith.addf %22, %23 : vector<8x16xf32>
    %cst_15 = arith.constant 0.176776692 : f32
    %25 = vector.broadcast %cst_15 : f32 to vector<8x16xf32>
    %26 = arith.mulf %24, %25 : vector<8x16xf32>
    %27 = arith.truncf %26 : vector<8x16xf32> to vector<8x16xbf16>
    %c0_16 = arith.constant 0 : index
    %c0_17 = arith.constant 0 : index
    %c0_18 = arith.constant 0 : index
    %c16 = arith.constant 16 : index
    %28 = vector.load %arg7[%c0_16, %c0_17, %c0_18, %c16] : memref<1x4x8x32xbf16, #tpu.memory_space<vmem>>, vector<1x1x8x16xbf16>
    %29 = vector.shape_cast %28 : vector<1x1x8x16xbf16> to vector<8x16xbf16>
    %30 = vector.shape_cast %27 : vector<8x16xbf16> to vector<1x1x8x16xbf16>
    tpu.vector_store %arg7[%c0_16, %c0_17, %c0_18, %c16], %30 {strides = array<i32>} : memref<1x4x8x32xbf16, #tpu.memory_space<vmem>>, vector<1x1x8x16xbf16>,
    %31 = arith.mulf %11, %8 : vector<8x16xf32>
    %32 = arith.mulf %12, %7 : vector<8x16xf32>
    %33 = arith.subf %31, %32 : vector<8x16xf32>
    %34 = arith.truncf %33 : vector<8x16xf32> to vector<8x16xbf16>
    %c0_19 = arith.constant 0 : index
    %c0_20 = arith.constant 0 : index
    %c0_21 = arith.constant 0 : index
    %c0_22 = arith.constant 0 : index
    %35 = vector.load %arg8[%c0_19, %c0_20, %c0_21, %c0_22] : memref<1x4x8x32xbf16, #tpu.memory_space<vmem>>, vector<1x1x8x16xbf16>
    %36 = vector.shape_cast %35 : vector<1x1x8x16xbf16> to vector<8x16xbf16>
    %37 = vector.shape_cast %34 : vector<8x16xbf16> to vector<1x1x8x16xbf16>
    tpu.vector_store %arg8[%c0_19, %c0_20, %c0_21, %c0_22], %37 {strides = array<i32>} : memref<1x4x8x32xbf16, #tpu.memory_space<vmem>>, vector<1x1x8x16xbf16>,
    %38 = arith.mulf %11, %7 : vector<8x16xf32>
    %39 = arith.mulf %12, %8 : vector<8x16xf32>
    %40 = arith.addf %38, %39 : vector<8x16xf32>
    %41 = arith.truncf %40 : vector<8x16xf32> to vector<8x16xbf16>
    %c0_23 = arith.constant 0 : index
    %c0_24 = arith.constant 0 : index
    %c0_25 = arith.constant 0 : index
    %c16_26 = arith.constant 16 : index
    %42 = vector.load %arg8[%c0_23, %c0_24, %c0_25, %c16_26] : memref<1x4x8x32xbf16, #tpu.memory_space<vmem>>, vector<1x1x8x16xbf16>
    %43 = vector.shape_cast %42 : vector<1x1x8x16xbf16> to vector<8x16xbf16>
    %44 = vector.shape_cast %41 : vector<8x16xbf16> to vector<1x1x8x16xbf16>
    tpu.vector_store %arg8[%c0_23, %c0_24, %c0_25, %c16_26], %44 {strides = array<i32>} : memref<1x4x8x32xbf16, #tpu.memory_space<vmem>>, vector<1x1x8x16xbf16>,
    %45 = vector.extract_strided_slice %6 {offsets = [0, 16], sizes = [8, 16], strides = [1, 1]} : vector<8x256xf32> to vector<8x16xf32>
    %46 = vector.extract_strided_slice %6 {offsets = [0, 80], sizes = [8, 16], strides = [1, 1]} : vector<8x256xf32> to vector<8x16xf32>
    %47 = vector.extract_strided_slice %6 {offsets = [0, 144], sizes = [8, 16], strides = [1, 1]} : vector<8x256xf32> to vector<8x16xf32>
    %48 = vector.extract_strided_slice %6 {offsets = [0, 208], sizes = [8, 16], strides = [1, 1]} : vector<8x256xf32> to vector<8x16xf32>
    %49 = arith.mulf %45, %8 : vector<8x16xf32>
    %50 = arith.mulf %46, %7 : vector<8x16xf32>
    %51 = arith.subf %49, %50 : vector<8x16xf32>
    %cst_27 = arith.constant 0.176776692 : f32
    %52 = vector.broadcast %cst_27 : f32 to vector<8x16xf32>
    %53 = arith.mulf %51, %52 : vector<8x16xf32>
    %54 = arith.truncf %53 : vector<8x16xf32> to vector<8x16xbf16>
    %c0_28 = arith.constant 0 : index
    %c1 = arith.constant 1 : index
    %c0_29 = arith.constant 0 : index
    %c0_30 = arith.constant 0 : index
    %55 = vector.load %arg7[%c0_28, %c1, %c0_29, %c0_30] : memref<1x4x8x32xbf16, #tpu.memory_space<vmem>>, vector<1x1x8x16xbf16>
    %56 = vector.shape_cast %55 : vector<1x1x8x16xbf16> to vector<8x16xbf16>
    %57 = vector.shape_cast %54 : vector<8x16xbf16> to vector<1x1x8x16xbf16>
    tpu.vector_store %arg7[%c0_28, %c1, %c0_29, %c0_30], %57 {strides = array<i32>} : memref<1x4x8x32xbf16, #tpu.memory_space<vmem>>, vector<1x1x8x16xbf16>,
    %58 = arith.mulf %45, %7 : vector<8x16xf32>
    %59 = arith.mulf %46, %8 : vector<8x16xf32>
    %60 = arith.addf %58, %59 : vector<8x16xf32>
    %cst_31 = arith.constant 0.176776692 : f32
    %61 = vector.broadcast %cst_31 : f32 to vector<8x16xf32>
    %62 = arith.mulf %60, %61 : vector<8x16xf32>
    %63 = arith.truncf %62 : vector<8x16xf32> to vector<8x16xbf16>
    %c0_32 = arith.constant 0 : index
    %c1_33 = arith.constant 1 : index
    %c0_34 = arith.constant 0 : index
    %c16_35 = arith.constant 16 : index
    %64 = vector.load %arg7[%c0_32, %c1_33, %c0_34, %c16_35] : memref<1x4x8x32xbf16, #tpu.memory_space<vmem>>, vector<1x1x8x16xbf16>
    %65 = vector.shape_cast %64 : vector<1x1x8x16xbf16> to vector<8x16xbf16>
    %66 = vector.shape_cast %63 : vector<8x16xbf16> to vector<1x1x8x16xbf16>
    tpu.vector_store %arg7[%c0_32, %c1_33, %c0_34, %c16_35], %66 {strides = array<i32>} : memref<1x4x8x32xbf16, #tpu.memory_space<vmem>>, vector<1x1x8x16xbf16>,
    %67 = arith.mulf %47, %8 : vector<8x16xf32>
    %68 = arith.mulf %48, %7 : vector<8x16xf32>
    %69 = arith.subf %67, %68 : vector<8x16xf32>
    %70 = arith.truncf %69 : vector<8x16xf32> to vector<8x16xbf16>
    %c0_36 = arith.constant 0 : index
    %c1_37 = arith.constant 1 : index
    %c0_38 = arith.constant 0 : index
    %c0_39 = arith.constant 0 : index
    %71 = vector.load %arg8[%c0_36, %c1_37, %c0_38, %c0_39] : memref<1x4x8x32xbf16, #tpu.memory_space<vmem>>, vector<1x1x8x16xbf16>
    %72 = vector.shape_cast %71 : vector<1x1x8x16xbf16> to vector<8x16xbf16>
    %73 = vector.shape_cast %70 : vector<8x16xbf16> to vector<1x1x8x16xbf16>
    tpu.vector_store %arg8[%c0_36, %c1_37, %c0_38, %c0_39], %73 {strides = array<i32>} : memref<1x4x8x32xbf16, #tpu.memory_space<vmem>>, vector<1x1x8x16xbf16>,
    %74 = arith.mulf %47, %7 : vector<8x16xf32>
    %75 = arith.mulf %48, %8 : vector<8x16xf32>
    %76 = arith.addf %74, %75 : vector<8x16xf32>
    %77 = arith.truncf %76 : vector<8x16xf32> to vector<8x16xbf16>
    %c0_40 = arith.constant 0 : index
    %c1_41 = arith.constant 1 : index
    %c0_42 = arith.constant 0 : index
    %c16_43 = arith.constant 16 : index
    %78 = vector.load %arg8[%c0_40, %c1_41, %c0_42, %c16_43] : memref<1x4x8x32xbf16, #tpu.memory_space<vmem>>, vector<1x1x8x16xbf16>
    %79 = vector.shape_cast %78 : vector<1x1x8x16xbf16> to vector<8x16xbf16>
    %80 = vector.shape_cast %77 : vector<8x16xbf16> to vector<1x1x8x16xbf16>
    tpu.vector_store %arg8[%c0_40, %c1_41, %c0_42, %c16_43], %80 {strides = array<i32>} : memref<1x4x8x32xbf16, #tpu.memory_space<vmem>>, vector<1x1x8x16xbf16>,
    %81 = vector.extract_strided_slice %6 {offsets = [0, 32], sizes = [8, 16], strides = [1, 1]} : vector<8x256xf32> to vector<8x16xf32>
    %82 = vector.extract_strided_slice %6 {offsets = [0, 96], sizes = [8, 16], strides = [1, 1]} : vector<8x256xf32> to vector<8x16xf32>
    %83 = vector.extract_strided_slice %6 {offsets = [0, 160], sizes = [8, 16], strides = [1, 1]} : vector<8x256xf32> to vector<8x16xf32>
    %84 = vector.extract_strided_slice %6 {offsets = [0, 224], sizes = [8, 16], strides = [1, 1]} : vector<8x256xf32> to vector<8x16xf32>
    %85 = arith.mulf %81, %8 : vector<8x16xf32>
    %86 = arith.mulf %82, %7 : vector<8x16xf32>
    %87 = arith.subf %85, %86 : vector<8x16xf32>
    %cst_44 = arith.constant 0.176776692 : f32
    %88 = vector.broadcast %cst_44 : f32 to vector<8x16xf32>
    %89 = arith.mulf %87, %88 : vector<8x16xf32>
    %90 = arith.truncf %89 : vector<8x16xf32> to vector<8x16xbf16>
    %c0_45 = arith.constant 0 : index
    %c2 = arith.constant 2 : index
    %c0_46 = arith.constant 0 : index
    %c0_47 = arith.constant 0 : index
    %91 = vector.load %arg7[%c0_45, %c2, %c0_46, %c0_47] : memref<1x4x8x32xbf16, #tpu.memory_space<vmem>>, vector<1x1x8x16xbf16>
    %92 = vector.shape_cast %91 : vector<1x1x8x16xbf16> to vector<8x16xbf16>
    %93 = vector.shape_cast %90 : vector<8x16xbf16> to vector<1x1x8x16xbf16>
    tpu.vector_store %arg7[%c0_45, %c2, %c0_46, %c0_47], %93 {strides = array<i32>} : memref<1x4x8x32xbf16, #tpu.memory_space<vmem>>, vector<1x1x8x16xbf16>,
    %94 = arith.mulf %81, %7 : vector<8x16xf32>
    %95 = arith.mulf %82, %8 : vector<8x16xf32>
    %96 = arith.addf %94, %95 : vector<8x16xf32>
    %cst_48 = arith.constant 0.176776692 : f32
    %97 = vector.broadcast %cst_48 : f32 to vector<8x16xf32>
    %98 = arith.mulf %96, %97 : vector<8x16xf32>
    %99 = arith.truncf %98 : vector<8x16xf32> to vector<8x16xbf16>
    %c0_49 = arith.constant 0 : index
    %c2_50 = arith.constant 2 : index
    %c0_51 = arith.constant 0 : index
    %c16_52 = arith.constant 16 : index
    %100 = vector.load %arg7[%c0_49, %c2_50, %c0_51, %c16_52] : memref<1x4x8x32xbf16, #tpu.memory_space<vmem>>, vector<1x1x8x16xbf16>
    %101 = vector.shape_cast %100 : vector<1x1x8x16xbf16> to vector<8x16xbf16>
    %102 = vector.shape_cast %99 : vector<8x16xbf16> to vector<1x1x8x16xbf16>
    tpu.vector_store %arg7[%c0_49, %c2_50, %c0_51, %c16_52], %102 {strides = array<i32>} : memref<1x4x8x32xbf16, #tpu.memory_space<vmem>>, vector<1x1x8x16xbf16>,
    %103 = arith.mulf %83, %8 : vector<8x16xf32>
    %104 = arith.mulf %84, %7 : vector<8x16xf32>
    %105 = arith.subf %103, %104 : vector<8x16xf32>
    %106 = arith.truncf %105 : vector<8x16xf32> to vector<8x16xbf16>
    %c0_53 = arith.constant 0 : index
    %c2_54 = arith.constant 2 : index
    %c0_55 = arith.constant 0 : index
    %c0_56 = arith.constant 0 : index
    %107 = vector.load %arg8[%c0_53, %c2_54, %c0_55, %c0_56] : memref<1x4x8x32xbf16, #tpu.memory_space<vmem>>, vector<1x1x8x16xbf16>
    %108 = vector.shape_cast %107 : vector<1x1x8x16xbf16> to vector<8x16xbf16>
    %109 = vector.shape_cast %106 : vector<8x16xbf16> to vector<1x1x8x16xbf16>
    tpu.vector_store %arg8[%c0_53, %c2_54, %c0_55, %c0_56], %109 {strides = array<i32>} : memref<1x4x8x32xbf16, #tpu.memory_space<vmem>>, vector<1x1x8x16xbf16>,
    %110 = arith.mulf %83, %7 : vector<8x16xf32>
    %111 = arith.mulf %84, %8 : vector<8x16xf32>
    %112 = arith.addf %110, %111 : vector<8x16xf32>
    %113 = arith.truncf %112 : vector<8x16xf32> to vector<8x16xbf16>
    %c0_57 = arith.constant 0 : index
    %c2_58 = arith.constant 2 : index
    %c0_59 = arith.constant 0 : index
    %c16_60 = arith.constant 16 : index
    %114 = vector.load %arg8[%c0_57, %c2_58, %c0_59, %c16_60] : memref<1x4x8x32xbf16, #tpu.memory_space<vmem>>, vector<1x1x8x16xbf16>
    %115 = vector.shape_cast %114 : vector<1x1x8x16xbf16> to vector<8x16xbf16>
    %116 = vector.shape_cast %113 : vector<8x16xbf16> to vector<1x1x8x16xbf16>
    tpu.vector_store %arg8[%c0_57, %c2_58, %c0_59, %c16_60], %116 {strides = array<i32>} : memref<1x4x8x32xbf16, #tpu.memory_space<vmem>>, vector<1x1x8x16xbf16>,
    %117 = vector.extract_strided_slice %6 {offsets = [0, 48], sizes = [8, 16], strides = [1, 1]} : vector<8x256xf32> to vector<8x16xf32>
    %118 = vector.extract_strided_slice %6 {offsets = [0, 112], sizes = [8, 16], strides = [1, 1]} : vector<8x256xf32> to vector<8x16xf32>
    %119 = vector.extract_strided_slice %6 {offsets = [0, 176], sizes = [8, 16], strides = [1, 1]} : vector<8x256xf32> to vector<8x16xf32>
    %120 = vector.extract_strided_slice %6 {offsets = [0, 240], sizes = [8, 16], strides = [1, 1]} : vector<8x256xf32> to vector<8x16xf32>
    %121 = arith.mulf %117, %8 : vector<8x16xf32>
    %122 = arith.mulf %118, %7 : vector<8x16xf32>
    %123 = arith.subf %121, %122 : vector<8x16xf32>
    %cst_61 = arith.constant 0.176776692 : f32
    %124 = vector.broadcast %cst_61 : f32 to vector<8x16xf32>
    %125 = arith.mulf %123, %124 : vector<8x16xf32>
    %126 = arith.truncf %125 : vector<8x16xf32> to vector<8x16xbf16>
    %c0_62 = arith.constant 0 : index
    %c3 = arith.constant 3 : index
    %c0_63 = arith.constant 0 : index
    %c0_64 = arith.constant 0 : index
    %127 = vector.load %arg7[%c0_62, %c3, %c0_63, %c0_64] : memref<1x4x8x32xbf16, #tpu.memory_space<vmem>>, vector<1x1x8x16xbf16>
    %128 = vector.shape_cast %127 : vector<1x1x8x16xbf16> to vector<8x16xbf16>
    %129 = vector.shape_cast %126 : vector<8x16xbf16> to vector<1x1x8x16xbf16>
    tpu.vector_store %arg7[%c0_62, %c3, %c0_63, %c0_64], %129 {strides = array<i32>} : memref<1x4x8x32xbf16, #tpu.memory_space<vmem>>, vector<1x1x8x16xbf16>,
    %130 = arith.mulf %117, %7 : vector<8x16xf32>
    %131 = arith.mulf %118, %8 : vector<8x16xf32>
    %132 = arith.addf %130, %131 : vector<8x16xf32>
    %cst_65 = arith.constant 0.176776692 : f32
    %133 = vector.broadcast %cst_65 : f32 to vector<8x16xf32>
    %134 = arith.mulf %132, %133 : vector<8x16xf32>
    %135 = arith.truncf %134 : vector<8x16xf32> to vector<8x16xbf16>
    %c0_66 = arith.constant 0 : index
    %c3_67 = arith.constant 3 : index
    %c0_68 = arith.constant 0 : index
    %c16_69 = arith.constant 16 : index
    %136 = vector.load %arg7[%c0_66, %c3_67, %c0_68, %c16_69] : memref<1x4x8x32xbf16, #tpu.memory_space<vmem>>, vector<1x1x8x16xbf16>
    %137 = vector.shape_cast %136 : vector<1x1x8x16xbf16> to vector<8x16xbf16>
    %138 = vector.shape_cast %135 : vector<8x16xbf16> to vector<1x1x8x16xbf16>
    tpu.vector_store %arg7[%c0_66, %c3_67, %c0_68, %c16_69], %138 {strides = array<i32>} : memref<1x4x8x32xbf16, #tpu.memory_space<vmem>>, vector<1x1x8x16xbf16>,
    %139 = arith.mulf %119, %8 : vector<8x16xf32>
    %140 = arith.mulf %120, %7 : vector<8x16xf32>
    %141 = arith.subf %139, %140 : vector<8x16xf32>
    %142 = arith.truncf %141 : vector<8x16xf32> to vector<8x16xbf16>
    %c0_70 = arith.constant 0 : index
    %c3_71 = arith.constant 3 : index
    %c0_72 = arith.constant 0 : index
    %c0_73 = arith.constant 0 : index
    %143 = vector.load %arg8[%c0_70, %c3_71, %c0_72, %c0_73] : memref<1x4x8x32xbf16, #tpu.memory_space<vmem>>, vector<1x1x8x16xbf16>
    %144 = vector.shape_cast %143 : vector<1x1x8x16xbf16> to vector<8x16xbf16>
    %145 = vector.shape_cast %142 : vector<8x16xbf16> to vector<1x1x8x16xbf16>
    tpu.vector_store %arg8[%c0_70, %c3_71, %c0_72, %c0_73], %145 {strides = array<i32>} : memref<1x4x8x32xbf16, #tpu.memory_space<vmem>>, vector<1x1x8x16xbf16>,
    %146 = arith.mulf %119, %7 : vector<8x16xf32>
    %147 = arith.mulf %120, %8 : vector<8x16xf32>
    %148 = arith.addf %146, %147 : vector<8x16xf32>
    %149 = arith.truncf %148 : vector<8x16xf32> to vector<8x16xbf16>
    %c0_74 = arith.constant 0 : index
    %c3_75 = arith.constant 3 : index
    %c0_76 = arith.constant 0 : index
    %c16_77 = arith.constant 16 : index
    %150 = vector.load %arg8[%c0_74, %c3_75, %c0_76, %c16_77] : memref<1x4x8x32xbf16, #tpu.memory_space<vmem>>, vector<1x1x8x16xbf16>
    %151 = vector.shape_cast %150 : vector<1x1x8x16xbf16> to vector<8x16xbf16>
    %152 = vector.shape_cast %149 : vector<8x16xbf16> to vector<1x1x8x16xbf16>
    tpu.vector_store %arg8[%c0_74, %c3_75, %c0_76, %c16_77], %152 {strides = array<i32>} : memref<1x4x8x32xbf16, #tpu.memory_space<vmem>>, vector<1x1x8x16xbf16>,
    return
  }
  func.func @transform_0(%arg0: i32, %arg1: i32) -> (i32, i32, i32) {
    %c0_i32 = arith.constant 0 : i32
    %c0_i32_0 = arith.constant 0 : i32
    return %arg0, %arg1, %c0_i32 : i32, i32, i32
  }
  func.func @transform_1(%arg0: i32, %arg1: i32) -> (i32, i32) {
    %c0_i32 = arith.constant 0 : i32
    %c0_i32_0 = arith.constant 0 : i32
    %c0_i32_1 = arith.constant 0 : i32
    return %c0_i32, %c0_i32_0 : i32, i32
  }
  func.func @transform_2(%arg0: i32, %arg1: i32) -> (i32, i32) {
    %c0_i32 = arith.constant 0 : i32
    %c0_i32_0 = arith.constant 0 : i32
    %c0_i32_1 = arith.constant 0 : i32
    return %c0_i32, %c0_i32_0 : i32, i32
  }
  func.func @transform_3(%arg0: i32, %arg1: i32) -> (i32, i32) {
    %c0_i32 = arith.constant 0 : i32
    %c0_i32_0 = arith.constant 0 : i32
    return %arg1, %c0_i32 : i32, i32
  }
  func.func @transform_4(%arg0: i32, %arg1: i32) -> (i32, i32) {
    %c0_i32 = arith.constant 0 : i32
    %c0_i32_0 = arith.constant 0 : i32
    return %arg1, %c0_i32 : i32, i32
  }
  func.func @transform_5(%arg0: i32, %arg1: i32) -> (i32, i32, i32, i32) {
    %c0_i32 = arith.constant 0 : i32
    %c0_i32_0 = arith.constant 0 : i32
    %c0_i32_1 = arith.constant 0 : i32
    return %arg0, %c0_i32, %arg1, %c0_i32_0 : i32, i32, i32, i32
  }
  func.func @transform_6(%arg0: i32, %arg1: i32) -> (i32, i32, i32, i32) {
    %c0_i32 = arith.constant 0 : i32
    %c0_i32_0 = arith.constant 0 : i32
    %c0_i32_1 = arith.constant 0 : i32
    return %arg0, %c0_i32, %arg1, %c0_i32_0 : i32, i32, i32, i32
  }
}

</mosaic_0001>

<llo_original>
// kernel: tpu_custom_call.1
$region0: #{tpu_custom_call.1}
  #allocation0 [shape = 'u32[]', space=smem, size = 0x4, offset = 0x4, fixed_abs, tag = 'smem constant byte address 0x4 - core index']
  #allocation1 [shape = 'u32[144,128]{1,0:T(1,128)}', space=vmem, size = 0x12000, scoped, tag = 'internal scratch']
  %s0 = inlined_call_operand.hbm [shape: bf16[2,8,32], index: 0, kind: input, shape index: {}]
  %s1 = inlined_call_operand.hbm [shape: bf16[32,256], index: 1, kind: input, shape index: {}]
  %s2 = inlined_call_operand.vmem [shape: f32[1,256], index: 2, kind: input, shape index: {}]
  %s3 = inlined_call_operand.vmem [shape: f32[8,16], index: 3, kind: input, shape index: {}]
  %s4 = inlined_call_operand.hbm [shape: f32[8,16], index: 4, kind: input, shape index: {}]
  %s5 = inlined_call_operand.hbm [shape: bf16[2,4,8,32], index: 5, kind: output, shape index: {0}]
  %s6 = inlined_call_operand.hbm [shape: bf16[2,4,8,32], index: 6, kind: output, shape index: {1}]
  %7 = xla_tuple %s5, %s6
  %s8 = sld [smem:[#allocation0]]
  $region73: #{tpu_custom_call.1} parent=0
    _
  %s10 = ssub.s32 1, %s8
  %s11 = scalar_select 0, %s10, %s8
  $region1: #{tpu_custom_call.1} parent=0
    #allocation2 [shape = 'u8[4096]{0}', space=vmem, size = 0x1000, scoped, tag = 'input window, operand 0']
    #allocation3 [shape = 's32[2]{0}', space=sflag, size = 0x8, scoped, tag = 'scoped memory for tpu_custom_call.1']
    #allocation4 [shape = 's32[2]{0}', space=sflag, size = 0x8, scoped, tag = 'scoped memory for tpu_custom_call.1']
    #allocation5 [shape = 'u8[16384]{0}', space=vmem, size = 0x4000, scoped, tag = 'input window, operand 1, single buffered']
    #allocation6 [shape = 's32[1]{0}', space=sflag, size = 0x4, scoped, tag = 'scoped memory for tpu_custom_call.1']
    #allocation7 [shape = 'u8[4096]{0}', space=vmem, size = 0x1000, scoped, tag = 'input window, operand 4, single buffered']
    #allocation8 [shape = 'u8[16384]{0}', space=vmem, size = 0x4000, scoped, tag = 'output window, operand 0']
    #allocation9 [shape = 'u8[16384]{0}', space=vmem, size = 0x4000, scoped, tag = 'output window, operand 1']
    #allocation10 [shape = 's32[2]{0}', space=sflag, size = 0x8, scoped, tag = 'scoped memory for tpu_custom_call.1']
    %12 = vsyncpa [#allocation3], 0
    %s13 = scalar_lea.sflag [#allocation3], 1
    %14 = vsyncpa %s13, 0
    %15 = vsyncpa [#allocation6], 0
    %16 = vsyncpa [#allocation4], 0
    %s17 = scalar_lea.sflag [#allocation4], 1
    %18 = vsyncpa %s17, 0
    %19 = vsyncpa [#allocation10], 0
    %s20 = scalar_lea.sflag [#allocation10], 1
    %21 = vsyncpa %s20, 0
    loop: start=0, step=1, limit=4
    $region2: #{tpu_custom_call.1} parent=1 // loop_pre_header
      _
    $region3: #{tpu_custom_call.1} parent=1 // loop_header
      %s23 = sphi 0, %s27
      %p24 = scmp.ge.s32.totalorder %s23, 4
      %s30 = sphi 0, %s42
      %s31 = sphi 0, %s38
      %s32 = sphi 0, %s30
      %s33 = sphi 0, %s31
      %s34 = sphi 0, %s32
      %s35 = sphi 0, %s33
      %s47 = sphi 0, %s49
      %s50 = sphi 0, %s47
      %s51 = sphi 0, %s50
      %s67 = sphi 0, %s51
      %s71 = sphi 0, %s71
      %s73 = sphi 0, %s71
      %s74 = sphi 0, %s73
      %s88 = sphi 0, %s74
      %s92 = sphi 0, %s92
      %s94 = sphi 0, %s92
      %s95 = sphi 0, %s94
      %s109 = sphi 0, %s95
      %s115 = sphi 0, %s117
      %s118 = sphi 0, %s115
      %s119 = sphi 0, %s118
      %s135 = sphi 0, %s119
      %s141 = sphi 0, %s143
      %s144 = sphi 0, %s141
      %s145 = sphi 0, %s144
      %s161 = sphi 0, %s145
      %s169 = sphi 0, %s171
      %s172 = sphi 0, %s169
      %s173 = sphi 0, %s172
      %s189 = sphi 0, %s173
      %s197 = sphi 0, %s199
      %s200 = sphi 0, %s197
      %s201 = sphi 0, %s200
      %s217 = sphi 0, %s201
    $region4: #{tpu_custom_call.1} parent=1 // loop_header_branch
      %26 = sbr.rel (%p24) target = $region8
    $region5: #{tpu_custom_call.1} parent=1 // loop_body
      %s28 = ssub.s32 %s23, 1
      %s29 = ssub.s32 %s23, 2
      %s36 = sadd.s32 1, %s31
      %p37 = scmp.ge.s32.totalorder %s36, 1
      %s38 = scalar_select %p37, 0, %s36
      %s39 = sadd.s32 1, %s30
      %s40 = scalar_select %p37, %s39, %s30
      %p41 = scmp.ge.s32.totalorder %s40, 2
      %s42 = scalar_select %p41, 0, %s40
      %s43 = ssub.s32 %s30, %s42
      %s44 = ssub.s32 %s31, %s38
      %s45 = sor.u32 %s43, %s44
      %p46 = scmp.eq.s32.totalorder %s45, 0
      %s48 = sadd.s32 %s47, 1
      %s49 = scalar_select %p46, %s47, %s48
      %p52 = pneg %p46
      %p53 = scmp.eq.s32.totalorder %s23, 1
      %p54 = por %p52, %p53
      %p55 = scmp.ne.s32.totalorder %s47, %s50
      %p56 = scmp.eq.s32.totalorder %s23, 0
      %p57 = por %p55, %p56
      %p58 = scmp.ne.s32.totalorder %s47, %s50
      %p59 = scmp.eq.s32.totalorder %s28, 1
      %p60 = por %p58, %p59
      %p61 = scmp.ne.s32.totalorder %s50, %s51
      %p62 = scmp.eq.s32.totalorder %s28, 0
      %p63 = por %p61, %p62
      %p64 = scmp.ne.s32.totalorder %s50, %s51
      %p65 = scmp.eq.s32.totalorder %s29, 1
      %p66 = por %p64, %p65
      %p68 = scmp.ne.s32.totalorder %s51, %s67
      %p69 = scmp.eq.s32.totalorder %s29, 0
      %p70 = por %p68, %p69
      %s72 = sadd.s32 %s71, 1
      %p75 = scmp.eq.s32.totalorder %s23, 1
      %p76 = scmp.ne.s32.totalorder %s71, %s73
      %p77 = scmp.eq.s32.totalorder %s23, 0
      %p78 = por %p76, %p77
      %p79 = scmp.ne.s32.totalorder %s71, %s73
      %p80 = scmp.eq.s32.totalorder %s28, 1
      %p81 = por %p79, %p80
      %p82 = scmp.ne.s32.totalorder %s73, %s74
      %p83 = scmp.eq.s32.totalorder %s28, 0
      %p84 = por %p82, %p83
      %p85 = scmp.ne.s32.totalorder %s73, %s74
      %p86 = scmp.eq.s32.totalorder %s29, 1
      %p87 = por %p85, %p86
      %p89 = scmp.ne.s32.totalorder %s74, %s88
      %p90 = scmp.eq.s32.totalorder %s29, 0
      %p91 = por %p89, %p90
      %s93 = sadd.s32 %s92, 1
      %p96 = scmp.eq.s32.totalorder %s23, 1
      %p97 = scmp.ne.s32.totalorder %s92, %s94
      %p98 = scmp.eq.s32.totalorder %s23, 0
      %p99 = por %p97, %p98
      %p100 = scmp.ne.s32.totalorder %s92, %s94
      %p101 = scmp.eq.s32.totalorder %s28, 1
      %p102 = por %p100, %p101
      %p103 = scmp.ne.s32.totalorder %s94, %s95
      %p104 = scmp.eq.s32.totalorder %s28, 0
      %p105 = por %p103, %p104
      %p106 = scmp.ne.s32.totalorder %s94, %s95
      %p107 = scmp.eq.s32.totalorder %s29, 1
      %p108 = por %p106, %p107
      %p110 = scmp.ne.s32.totalorder %s95, %s109
      %p111 = scmp.eq.s32.totalorder %s29, 0
      %p112 = por %p110, %p111
      %s113 = ssub.s32 %s31, %s38
      %p114 = scmp.eq.s32.totalorder %s113, 0
      %s116 = sadd.s32 %s115, 1
      %s117 = scalar_select %p114, %s115, %s116
      %p120 = pneg %p114
      %p121 = scmp.eq.s32.totalorder %s23, 1
      %p122 = por %p120, %p121
      %p123 = scmp.ne.s32.totalorder %s115, %s118
      %p124 = scmp.eq.s32.totalorder %s23, 0
      %p125 = por %p123, %p124
      %p126 = scmp.ne.s32.totalorder %s115, %s118
      %p127 = scmp.eq.s32.totalorder %s28, 1
      %p128 = por %p126, %p127
      %p129 = scmp.ne.s32.totalorder %s118, %s119
      %p130 = scmp.eq.s32.totalorder %s28, 0
      %p131 = por %p129, %p130
      %p132 = scmp.ne.s32.totalorder %s118, %s119
      %p133 = scmp.eq.s32.totalorder %s29, 1
      %p134 = por %p132, %p133
      %p136 = scmp.ne.s32.totalorder %s119, %s135
      %p137 = scmp.eq.s32.totalorder %s29, 0
      %p138 = por %p136, %p137
      %s139 = ssub.s32 %s31, %s38
      %p140 = scmp.eq.s32.totalorder %s139, 0
      %s142 = sadd.s32 %s141, 1
      %s143 = scalar_select %p140, %s141, %s142
      %p146 = pneg %p140
      %p147 = scmp.eq.s32.totalorder %s23, 1
      %p148 = por %p146, %p147
      %p149 = scmp.ne.s32.totalorder %s141, %s144
      %p150 = scmp.eq.s32.totalorder %s23, 0
      %p151 = por %p149, %p150
      %p152 = scmp.ne.s32.totalorder %s141, %s144
      %p153 = scmp.eq.s32.totalorder %s28, 1
      %p154 = por %p152, %p153
      %p155 = scmp.ne.s32.totalorder %s144, %s145
      %p156 = scmp.eq.s32.totalorder %s28, 0
      %p157 = por %p155, %p156
      %p158 = scmp.ne.s32.totalorder %s144, %s145
      %p159 = scmp.eq.s32.totalorder %s29, 1
      %p160 = por %p158, %p159
      %p162 = scmp.ne.s32.totalorder %s145, %s161
      %p163 = scmp.eq.s32.totalorder %s29, 0
      %p164 = por %p162, %p163
      %s165 = ssub.s32 %s30, %s42
      %s166 = ssub.s32 %s31, %s38
      %s167 = sor.u32 %s165, %s166
      %p168 = scmp.eq.s32.totalorder %s167, 0
      %s170 = sadd.s32 %s169, 1
      %s171 = scalar_select %p168, %s169, %s170
      %p174 = pneg %p168
      %p175 = scmp.eq.s32.totalorder %s23, 1
      %p176 = por %p174, %p175
      %p177 = scmp.ne.s32.totalorder %s169, %s172
      %p178 = scmp.eq.s32.totalorder %s23, 0
      %p179 = por %p177, %p178
      %p180 = scmp.ne.s32.totalorder %s169, %s172
      %p181 = scmp.eq.s32.totalorder %s28, 1
      %p182 = por %p180, %p181
      %p183 = scmp.ne.s32.totalorder %s172, %s173
      %p184 = scmp.eq.s32.totalorder %s28, 0
      %p185 = por %p183, %p184
      %p186 = scmp.ne.s32.totalorder %s172, %s173
      %p187 = scmp.eq.s32.totalorder %s29, 1
      %p188 = por %p186, %p187
      %p190 = scmp.ne.s32.totalorder %s173, %s189
      %p191 = scmp.eq.s32.totalorder %s29, 0
      %p192 = por %p190, %p191
      %s193 = ssub.s32 %s30, %s42
      %s194 = ssub.s32 %s31, %s38
      %s195 = sor.u32 %s193, %s194
      %p196 = scmp.eq.s32.totalorder %s195, 0
      %s198 = sadd.s32 %s197, 1
      %s199 = scalar_select %p196, %s197, %s198
      %p202 = pneg %p196
      %p203 = scmp.eq.s32.totalorder %s23, 1
      %p204 = por %p202, %p203
      %p205 = scmp.ne.s32.totalorder %s197, %s200
      %p206 = scmp.eq.s32.totalorder %s23, 0
      %p207 = por %p205, %p206
      %p208 = scmp.ne.s32.totalorder %s197, %s200
      %p209 = scmp.eq.s32.totalorder %s28, 1
      %p210 = por %p208, %p209
      %p211 = scmp.ne.s32.totalorder %s200, %s201
      %p212 = scmp.eq.s32.totalorder %s28, 0
      %p213 = por %p211, %p212
      %p214 = scmp.ne.s32.totalorder %s200, %s201
      %p215 = scmp.eq.s32.totalorder %s29, 1
      %p216 = por %p214, %p215
      %p218 = scmp.ne.s32.totalorder %s201, %s217
      %p219 = scmp.eq.s32.totalorder %s29, 0
      %p220 = por %p218, %p219
      %p221 = scmp.le.s32.totalorder 1, %s23
      %p222 = scmp.lt.s32.totalorder %s23, 3
      %p223 = pnand %p221, %p222
      %p224 = pneg %p223
      // Predicated region
      $region9: #{tpu_custom_call.1} parent=5 // pred_check
        _
      $region10: #{tpu_custom_call.1} parent=5 // pred_check_branch
        %226 = sbr.rel (%p223) target = $region12
      $region11: #{tpu_custom_call.1} parent=5 // pred_region
        %s227 = ssub.s32 %s23, 1
        // Predicated region
        $region13: #{tpu_custom_call.1} parent=11 // pred_check
          %p228 = pneg %p84
        $region14: #{tpu_custom_call.1} parent=11 // pred_check_branch
          %230 = sbr.rel (%p228) target = $region16
        $region15: #{tpu_custom_call.1} parent=11 // pred_region
          %s232 = ssub.s32 512, 512
          %233 = vsyncadd [#allocation6], %s232
          %s234 = sshll.u32 [#allocation5], 4
          %s235 = int_to_ptr.vmem [resolvable:$true] %s234
          %240 = dma.hbm_to_vmem [thread:$0]  %s1, 512, %s235, [#allocation6], 128, 128, 8
        $region16: #{tpu_custom_call.1} parent=11 // pred_fallthru
          _
        // Predicated region
        $region17: #{tpu_custom_call.1} parent=11 // pred_check
          %p241 = pneg %p105
        $region18: #{tpu_custom_call.1} parent=11 // pred_check_branch
          %243 = sbr.rel (%p241) target = $region20
        $region19: #{tpu_custom_call.1} parent=11 // pred_region
          _
        $region20: #{tpu_custom_call.1} parent=11 // pred_fallthru
          _
        // Predicated region
        $region21: #{tpu_custom_call.1} parent=11 // pred_check
          %p244 = pneg %p131
        $region22: #{tpu_custom_call.1} parent=11 // pred_check_branch
          %246 = sbr.rel (%p244) target = $region24
        $region23: #{tpu_custom_call.1} parent=11 // pred_region
          %p247 = scmp.lt.s32.totalorder %s33, 0
          %s248 = scalar_select %p247, %s33, 0
          %s249 = smul.addr %s248, 8
          %s250 = scalar_lea.vmem %s3, %s249
        $region24: #{tpu_custom_call.1} parent=11 // pred_fallthru
          _
        // Predicated region
        $region25: #{tpu_custom_call.1} parent=11 // pred_check
          %p251 = pneg %p157
        $region26: #{tpu_custom_call.1} parent=11 // pred_check_branch
          %253 = sbr.rel (%p251) target = $region28
        $region27: #{tpu_custom_call.1} parent=11 // pred_region
          %s255 = ssub.s32 128, 128
          %256 = vsyncadd [#allocation6], %s255
          %s257 = smul.addr %s33, 128
          %s258 = scalar_lea.hbm %s4, %s257
          %s260 = sshll.u32 [#allocation7], 4
          %s261 = int_to_ptr.vmem [resolvable:$true] %s260
          %263 = dma.hbm_to_vmem [thread:$0]  %s258, 128, %s261, [#allocation6]
        $region28: #{tpu_custom_call.1} parent=11 // pred_fallthru
          _
      $region12: #{tpu_custom_call.1} parent=5 // pred_fallthru
        _
      %p264 = scmp.lt.s32.totalorder %s23, 2
      // Predicated region
      $region29: #{tpu_custom_call.1} parent=5 // pred_check
        %p265 = pneg %p264
      $region30: #{tpu_custom_call.1} parent=5 // pred_check_branch
        %267 = sbr.rel (%p265) target = $region32
      $region31: #{tpu_custom_call.1} parent=5 // pred_region
        // Predicated region
        $region33: #{tpu_custom_call.1} parent=31 // pred_check
          %p268 = pneg %p57
        $region34: #{tpu_custom_call.1} parent=31 // pred_check_branch
          %270 = sbr.rel (%p268) target = $region36
        $region35: #{tpu_custom_call.1} parent=31 // pred_region
          %s271 = sand.u32 %s47, 1
          %s272 = scalar_lea.sflag [#allocation3], %s271
          %s273 = sand.u32 %s47, 1
          %s274 = smul.addr %s273, 4
          %s275 = scalar_lea.vmem [#allocation2], %s274
          %s277 = ssub.s32 64, 64
          %278 = vsyncadd %s272, %s277
          %s279 = sadd.s32 %s31, %s30
          %s280 = smul.addr %s279, 64
          %s281 = scalar_lea.hbm %s0, %s280
          %s283 = sshll.u32 %s275, 4
          %s284 = int_to_ptr.vmem [resolvable:$true] %s283
          %286 = dma.hbm_to_vmem [thread:$0]  %s281, 64, %s284, %s272
        $region36: #{tpu_custom_call.1} parent=31 // pred_fallthru
          _
      $region32: #{tpu_custom_call.1} parent=5 // pred_fallthru
        _
      %p287 = scmp.le.s32.totalorder 1, %s23
      %p288 = scmp.lt.s32.totalorder %s23, 3
      %p289 = pnand %p287, %p288
      %p290 = pneg %p289
      // Predicated region
      $region37: #{tpu_custom_call.1} parent=5 // pred_check
        _
      $region38: #{tpu_custom_call.1} parent=5 // pred_check_branch
        %292 = sbr.rel (%p289) target = $region40
      $region39: #{tpu_custom_call.1} parent=5 // pred_region
        %s293 = ssub.s32 %s23, 1
        %s294 = sand.u32 %s50, 1
        %s295 = scalar_lea.sflag [#allocation3], %s294
        %s296 = sand.u32 %s50, 1
        %s297 = smul.addr %s296, 4
        %s298 = scalar_lea.vmem [#allocation2], %s297
        // Predicated region
        $region41: #{tpu_custom_call.1} parent=39 // pred_check
          %p299 = pneg %p63
        $region42: #{tpu_custom_call.1} parent=39 // pred_check_branch
          %301 = sbr.rel (%p299) target = $region44
        $region43: #{tpu_custom_call.1} parent=39 // pred_region
          %302 = dma.done %s295, 64
        $region44: #{tpu_custom_call.1} parent=39 // pred_fallthru
          _
        // Predicated region
        $region45: #{tpu_custom_call.1} parent=39 // pred_check
          %p303 = pneg %p84
        $region46: #{tpu_custom_call.1} parent=39 // pred_check_branch
          %305 = sbr.rel (%p303) target = $region48
        $region47: #{tpu_custom_call.1} parent=39 // pred_region
          %306 = dma.done [#allocation6], 512
        $region48: #{tpu_custom_call.1} parent=39 // pred_fallthru
          _
        // Predicated region
        $region49: #{tpu_custom_call.1} parent=39 // pred_check
          %p307 = pneg %p157
        $region50: #{tpu_custom_call.1} parent=39 // pred_check_branch
          %309 = sbr.rel (%p307) target = $region52
        $region51: #{tpu_custom_call.1} parent=39 // pred_region
          %310 = dma.done [#allocation6], 128
        $region52: #{tpu_custom_call.1} parent=39 // pred_fallthru
          _
        %s311 = sand.u32 %s50, 1
        %s312 = scalar_lea.sflag [#allocation3], %s311
        %s313 = sand.u32 %s50, 1
        %s314 = smul.addr %s313, 4
        %s315 = scalar_lea.vmem [#allocation2], %s314
        %p316 = pneg %p63
        %p317 = pneg %p60
        %p318 = pneg %p84
        %p319 = pneg %p81
        %p320 = pneg %p105
        %p321 = pneg %p102
        %p322 = scmp.lt.s32.totalorder %s33, 0
        %s323 = scalar_select %p322, %s33, 0
        %s324 = smul.addr %s323, 8
        %s325 = scalar_lea.vmem %s3, %s324
        %p326 = pneg %p131
        %p327 = pneg %p128
        %p328 = pneg %p157
        %p329 = pneg %p154
        %p330 = pneg %p185
        %p331 = pneg %p182
        %s332 = sand.u32 %s172, 1
        %s333 = scalar_lea.sflag [#allocation4], %s332
        %s334 = sand.u32 %s172, 1
        %s335 = smul.addr %s334, 16
        %s336 = scalar_lea.vmem [#allocation8], %s335
        %p337 = pneg %p213
        %p338 = pneg %p210
        %s339 = sand.u32 %s200, 1
        %s340 = scalar_lea.sflag [#allocation10], %s339
        %s341 = sand.u32 %s200, 1
        %s342 = smul.addr %s341, 16
        %s343 = scalar_lea.vmem [#allocation9], %s342
        %p344 = scmp.lt.s32.totalorder %s33, 0
        %s345 = scalar_select %p344, %s33, 0
        %s346 = smul.addr %s345, 8
        %s347 = scalar_lea.vmem %s3, %s346
        %v349 = vld [vmem:[%s298] sm:$0xf]
        %v350 = vld [vmem:[#allocation5] sm:$0xff]
        %v351 = vld [vmem:[#allocation5 + $0x8] sm:$0xff]
        %v352 = vld [vmem:[#allocation5 + $0x10] sm:$0xff]
        %v353 = vld [vmem:[#allocation5 + $0x18] sm:$0xff]
        %v354 = vld [vmem:[%s2] sm:$0x3]
        %v356 = vlaneseq
        %v357 = vshrl.u32 %v356, 7
        %v358 = vsub.s32 0, %v357
        %v359 = vrot.slane %v354, %v358
        %v360 = vlaneseq
        %v361 = vshrl.u32 %v360, 7
        %v362 = vsub.s32 1, %v361
        %v363 = vrot.slane %v354, %v362
        %v370 = vunpack.c.l.b16 %v350
        %v371 = vunpack.c.h.b16 %v350
        %v372 = vunpack.c.l.b16 %v351
        %v373 = vunpack.c.h.b16 %v351
        %v374 = vunpack.c.l.b16 %v352
        %v375 = vunpack.c.h.b16 %v352
        %v376 = vunpack.c.l.b16 %v353
        %v377 = vunpack.c.h.b16 %v353
        %v378 = vpack.c.b16 %v372, %v370
        %v379 = vpack.c.b16 %v373, %v371
        %v380 = vpack.c.b16 %v376, %v374
        %v381 = vpack.c.b16 %v377, %v375
        %vm386 = vcmask 261120
        %v388 = vsel %vm386, %v349, 0
        %390 = vmatprep.subr.bf16.mxu0 %v379
        %391 = vmatpush1.bf16.msra.mxu0 %v378
        %392 = vmatprep.subr.bf16.mxu0 %v381
        %393 = vmatpush1.bf16.msra.mxu0 %v380
        %394 = vmatprep.subr.bf16.mxu0 0
        %395 = vmatpush1.bf16.msra.mxu0 0
        %396 = vmatprep.subr.bf16.mxu0 0
        %397 = vmatpush1.bf16.msra.mxu0 0
        %398 = vmatprep.subr.bf16.mxu0 0
        %399 = vmatpush1.bf16.msra.mxu0 0
        %400 = vmatprep.subr.bf16.mxu0 0
        %401 = vmatpush1.bf16.msra.mxu0 0
        %402 = vmatprep.subr.bf16.mxu0 0
        %403 = vmatpush1.bf16.msra.mxu0 0
        %404 = vmatprep.subr.bf16.mxu0 0
        %405 = vmatpush1.bf16.msra.mxu0 0
        %406 = vmatprep.subr.bf16.mxu0 0
        %407 = vmatpush1.bf16.msra.mxu0 0
        %408 = vmatprep.subr.bf16.mxu0 0
        %409 = vmatpush1.bf16.msra.mxu0 0
        %410 = vmatprep.subr.bf16.mxu0 0
        %411 = vmatpush1.bf16.msra.mxu0 0
        %412 = vmatprep.subr.bf16.mxu0 0
        %413 = vmatpush1.bf16.msra.mxu0 0
        %414 = vmatprep.subr.bf16.mxu0 0
        %415 = vmatpush1.bf16.msra.mxu0 0
        %416 = vmatprep.subr.bf16.mxu0 0
        %417 = vmatpush1.bf16.msra.mxu0 0
        %418 = vmatprep.subr.bf16.mxu0 0
        %419 = vmatpush1.bf16.msra.mxu0 0
        %420 = vmatprep.subr.bf16.mxu0 0
        %421 = vmatpush1.bf16.msra.mxu0 0
        %422 = vmatprep.mubr.bf16.mxu0 0
        %423 = vmatmul.mubr.bf16.gmra.mrb[0].mxu0 %v388
        %v424 = vpop.f32.mrb[0].mxu0
        %v425 = vadd.f32 %v359, %v424
        %v426 = vpop.f32.mrb[0].mxu0
        %v427 = vadd.f32 %v363, %v426
        %v428 = vpop.f32.mrb[0].mxu0
        %v429 = vpop.f32.mrb[0].mxu0
        %430 = vdwg.mxu0
        %v431 = vld [vmem:[%s347] sm:$0xff]
        %v432 = vld [vmem:[#allocation7] sm:$0xff]
        %v433 = vmul.f32 %v425, %v432
        %435 = vrot.lane.b32.xlu0 %v431, 64
        %v436 = vpop.permute.xlu0 %435
        %v438 = vmul.f32 %v425, %v436
        %440 = vrot.lane.b32.xlu0 %v438, 64
        %v441 = vpop.permute.xlu0 %440
        %v443 = vsub.f32 %v433, %v441
        %v444 = vmul.f32 %v443, 0.17677669
        %v445 = vpack.c.bf16 %v444, %v444
        %vm446 = vcmask 125952
        %447 = vst.msk [vmem:[%s336] sm:$0xf] %vm446, %v445
        %v448 = vmul.f32 %v425, %v431
        %450 = vrot.lane.b32.xlu0 %v432, 64
        %v451 = vpop.permute.xlu0 %450
        %v453 = vmul.f32 %v425, %v451
        %455 = vrot.lane.b32.xlu0 %v453, 64
        %v456 = vpop.permute.xlu0 %455
        %v458 = vadd.f32 %v448, %v456
        %v459 = vmul.f32 %v458, 0.17677669
        %v460 = vpack.c.bf16 %v459, %v459
        %v462 = vunpack.c.l.b16 %v460
        %v463 = vpack.c.b16 %v462, %v462
        %464 = vrot.lane.b32.xlu0 %v463, 16
        %v465 = vpop.permute.xlu0 %464
        %vm467 = vcmask 257152
        %468 = vst.msk [vmem:[%s336] sm:$0xf] %vm467, %v465
        %v469 = vmul.f32 %v427, %v432
        %v470 = vmul.f32 %v427, %v436
        %472 = vrot.lane.b32.xlu0 %v470, 64
        %v473 = vpop.permute.xlu0 %472
        %v475 = vsub.f32 %v469, %v473
        %v476 = vpack.c.bf16 %v475, %v475
        %477 = vst.msk [vmem:[%s343] sm:$0xf] %vm446, %v476
        %v478 = vmul.f32 %v427, %v431
        %v479 = vmul.f32 %v427, %v451
        %481 = vrot.lane.b32.xlu0 %v479, 64
        %v482 = vpop.permute.xlu0 %481
        %v484 = vadd.f32 %v478, %v482
        %v485 = vpack.c.bf16 %v484, %v484
        %v487 = vunpack.c.l.b16 %v485
        %v488 = vpack.c.b16 %v487, %v487
        %489 = vrot.lane.b32.xlu0 %v488, 16
        %v490 = vpop.permute.xlu0 %489
        %492 = vst.msk [vmem:[%s343] sm:$0xf] %vm467, %v490
        %493 = vrot.lane.b32.xlu0 %v432, 16
        %v494 = vpop.permute.xlu0 %493
        %v496 = vmul.f32 %v425, %v494
        %497 = vrot.lane.b32.xlu0 %v431, 80
        %v498 = vpop.permute.xlu0 %497
        %v500 = vmul.f32 %v425, %v498
        %502 = vrot.lane.b32.xlu0 %v500, 64
        %v503 = vpop.permute.xlu0 %502
        %v505 = vsub.f32 %v496, %v503
        %v506 = vmul.f32 %v505, 0.17677669
        %v507 = vpack.c.bf16 %v506, %v506
        %v509 = vunpack.c.l.b16 %v507
        %v510 = vpack.c.b16 %v509, %v509
        %511 = vrot.lane.b32.xlu0 %v510, 112
        %v512 = vpop.permute.xlu0 %511
        %s514 = scalar_lea.vmem %s336, 4 [#allocation8]
        %515 = vst.msk [vmem:[%s514] sm:$0xf] %vm446, %v512
        %516 = vrot.lane.b32.xlu0 %v431, 16
        %v517 = vpop.permute.xlu0 %516
        %v519 = vmul.f32 %v425, %v517
        %520 = vrot.lane.b32.xlu0 %v432, 80
        %v521 = vpop.permute.xlu0 %520
        %v523 = vmul.f32 %v425, %v521
        %525 = vrot.lane.b32.xlu0 %v523, 64
        %v526 = vpop.permute.xlu0 %525
        %v528 = vadd.f32 %v519, %v526
        %v529 = vmul.f32 %v528, 0.17677669
        %v530 = vpack.c.bf16 %v529, %v529
        %531 = vst.msk [vmem:[%s514] sm:$0xf] %vm467, %v530
        %v532 = vmul.f32 %v427, %v494
        %v533 = vmul.f32 %v427, %v498
        %535 = vrot.lane.b32.xlu0 %v533, 64
        %v536 = vpop.permute.xlu0 %535
        %v538 = vsub.f32 %v532, %v536
        %v539 = vpack.c.bf16 %v538, %v538
        %v541 = vunpack.c.l.b16 %v539
        %v542 = vpack.c.b16 %v541, %v541
        %543 = vrot.lane.b32.xlu0 %v542, 112
        %v544 = vpop.permute.xlu0 %543
        %s546 = scalar_lea.vmem %s343, 4 [#allocation9]
        %547 = vst.msk [vmem:[%s546] sm:$0xf] %vm446, %v544
        %v548 = vmul.f32 %v427, %v517
        %v549 = vmul.f32 %v427, %v521
        %551 = vrot.lane.b32.xlu0 %v549, 64
        %v552 = vpop.permute.xlu0 %551
        %v554 = vadd.f32 %v548, %v552
        %v555 = vpack.c.bf16 %v554, %v554
        %556 = vst.msk [vmem:[%s546] sm:$0xf] %vm467, %v555
        %557 = vrot.lane.b32.xlu0 %v432, 32
        %v558 = vpop.permute.xlu0 %557
        %v560 = vmul.f32 %v425, %v558
        %561 = vrot.lane.b32.xlu0 %v431, 96
        %v562 = vpop.permute.xlu0 %561
        %v564 = vmul.f32 %v425, %v562
        %566 = vrot.lane.b32.xlu0 %v564, 64
        %v567 = vpop.permute.xlu0 %566
        %v569 = vsub.f32 %v560, %v567
        %v570 = vmul.f32 %v569, 0.17677669
        %v571 = vpack.c.bf16 %v570, %v570
        %v573 = vunpack.c.l.b16 %v571
        %v574 = vpack.c.b16 %v573, %v573
        %575 = vrot.lane.b32.xlu0 %v574, 96
        %v576 = vpop.permute.xlu0 %575
        %s578 = scalar_lea.vmem %s336, 8 [#allocation8]
        %579 = vst.msk [vmem:[%s578] sm:$0xf] %vm446, %v576
        %580 = vrot.lane.b32.xlu0 %v431, 32
        %v581 = vpop.permute.xlu0 %580
        %v583 = vmul.f32 %v425, %v581
        %584 = vrot.lane.b32.xlu0 %v432, 96
        %v585 = vpop.permute.xlu0 %584
        %v587 = vmul.f32 %v425, %v585
        %589 = vrot.lane.b32.xlu0 %v587, 64
        %v590 = vpop.permute.xlu0 %589
        %v592 = vadd.f32 %v583, %v590
        %v593 = vmul.f32 %v592, 0.17677669
        %v594 = vpack.c.bf16 %v593, %v593
        %v596 = vunpack.c.l.b16 %v594
        %v597 = vpack.c.b16 %v596, %v596
        %598 = vrot.lane.b32.xlu0 %v597, 112
        %v599 = vpop.permute.xlu0 %598
        %601 = vst.msk [vmem:[%s578] sm:$0xf] %vm467, %v599
        %v602 = vmul.f32 %v427, %v558
        %v603 = vmul.f32 %v427, %v562
        %605 = vrot.lane.b32.xlu0 %v603, 64
        %v606 = vpop.permute.xlu0 %605
        %v608 = vsub.f32 %v602, %v606
        %v609 = vpack.c.bf16 %v608, %v608
        %v611 = vunpack.c.l.b16 %v609
        %v612 = vpack.c.b16 %v611, %v611
        %613 = vrot.lane.b32.xlu0 %v612, 96
        %v614 = vpop.permute.xlu0 %613
        %s616 = scalar_lea.vmem %s343, 8 [#allocation9]
        %617 = vst.msk [vmem:[%s616] sm:$0xf] %vm446, %v614
        %v618 = vmul.f32 %v427, %v581
        %v619 = vmul.f32 %v427, %v585
        %621 = vrot.lane.b32.xlu0 %v619, 64
        %v622 = vpop.permute.xlu0 %621
        %v624 = vadd.f32 %v618, %v622
        %v625 = vpack.c.bf16 %v624, %v624
        %v627 = vunpack.c.l.b16 %v625
        %v628 = vpack.c.b16 %v627, %v627
        %629 = vrot.lane.b32.xlu0 %v628, 112
        %v630 = vpop.permute.xlu0 %629
        %632 = vst.msk [vmem:[%s616] sm:$0xf] %vm467, %v630
        %633 = vrot.lane.b32.xlu0 %v432, 48
        %v634 = vpop.permute.xlu0 %633
        %v636 = vmul.f32 %v425, %v634
        %637 = vrot.lane.b32.xlu0 %v431, 112
        %v638 = vpop.permute.xlu0 %637
        %v640 = vmul.f32 %v425, %v638
        %642 = vrot.lane.b32.xlu0 %v640, 64
        %v643 = vpop.permute.xlu0 %642
        %v645 = vsub.f32 %v636, %v643
        %v646 = vmul.f32 %v645, 0.17677669
        %v647 = vpack.c.bf16 %v646, %v646
        %v649 = vunpack.c.l.b16 %v647
        %v650 = vpack.c.b16 %v649, %v649
        %651 = vrot.lane.b32.xlu0 %v650, 80
        %v652 = vpop.permute.xlu0 %651
        %s654 = scalar_lea.vmem %s336, 12 [#allocation8]
        %655 = vst.msk [vmem:[%s654] sm:$0xf] %vm446, %v652
        %656 = vrot.lane.b32.xlu0 %v431, 48
        %v657 = vpop.permute.xlu0 %656
        %v659 = vmul.f32 %v425, %v657
        %660 = vrot.lane.b32.xlu0 %v432, 112
        %v661 = vpop.permute.xlu0 %660
        %v663 = vmul.f32 %v425, %v661
        %665 = vrot.lane.b32.xlu0 %v663, 64
        %v666 = vpop.permute.xlu0 %665
        %v668 = vadd.f32 %v659, %v666
        %v669 = vmul.f32 %v668, 0.17677669
        %v670 = vpack.c.bf16 %v669, %v669
        %v672 = vunpack.c.l.b16 %v670
        %v673 = vpack.c.b16 %v672, %v672
        %674 = vrot.lane.b32.xlu0 %v673, 96
        %v675 = vpop.permute.xlu0 %674
        %677 = vst.msk [vmem:[%s654] sm:$0xf] %vm467, %v675
        %v678 = vmul.f32 %v427, %v634
        %v679 = vmul.f32 %v427, %v638
        %681 = vrot.lane.b32.xlu0 %v679, 64
        %v682 = vpop.permute.xlu0 %681
        %v684 = vsub.f32 %v678, %v682
        %v685 = vpack.c.bf16 %v684, %v684
        %v687 = vunpack.c.l.b16 %v685
        %v688 = vpack.c.b16 %v687, %v687
        %689 = vrot.lane.b32.xlu0 %v688, 80
        %v690 = vpop.permute.xlu0 %689
        %s692 = scalar_lea.vmem %s343, 12 [#allocation9]
        %693 = vst.msk [vmem:[%s692] sm:$0xf] %vm446, %v690
        %v694 = vmul.f32 %v427, %v657
        %v695 = vmul.f32 %v427, %v661
        %697 = vrot.lane.b32.xlu0 %v695, 64
        %v698 = vpop.permute.xlu0 %697
        %v700 = vadd.f32 %v694, %v698
        %v701 = vpack.c.bf16 %v700, %v700
        %v703 = vunpack.c.l.b16 %v701
        %v704 = vpack.c.b16 %v703, %v703
        %705 = vrot.lane.b32.xlu0 %v704, 96
        %v706 = vpop.permute.xlu0 %705
        %708 = vst.msk [vmem:[%s692] sm:$0xf] %vm467, %v706
        %s709 = sand.u32 %s172, 1
        %s710 = scalar_lea.sflag [#allocation4], %s709
        %s711 = sand.u32 %s172, 1
        %s712 = smul.addr %s711, 16
        %s713 = scalar_lea.vmem [#allocation8], %s712
        %s714 = sand.u32 %s200, 1
        %s715 = scalar_lea.sflag [#allocation10], %s714
        %s716 = sand.u32 %s200, 1
        %s717 = smul.addr %s716, 16
        %s718 = scalar_lea.vmem [#allocation9], %s717
        // Predicated region
        $region53: #{tpu_custom_call.1} parent=39 // pred_check
          %p719 = pneg %p182
        $region54: #{tpu_custom_call.1} parent=39 // pred_check_branch
          %721 = sbr.rel (%p719) target = $region56
        $region55: #{tpu_custom_call.1} parent=39 // pred_region
          %s723 = ssub.s32 256, 256
          %724 = vsyncadd %s710, %s723
          %s725 = smul.addr %s32, 4
          %s726 = sadd.s32 %s33, %s725
          %s727 = smul.addr %s726, 64
          %s728 = scalar_lea.hbm %s5, %s727
          %s729 = sshll.u32 %s713, 4
          %s730 = int_to_ptr.vmem [resolvable:$true] %s729
          %735 = dma.vmem_to_hbm [thread:$0]  %s730, 256, %s728, %s710, 64, 64, 4
        $region56: #{tpu_custom_call.1} parent=39 // pred_fallthru
          _
        // Predicated region
        $region57: #{tpu_custom_call.1} parent=39 // pred_check
          %p736 = pneg %p210
        $region58: #{tpu_custom_call.1} parent=39 // pred_check_branch
          %738 = sbr.rel (%p736) target = $region60
        $region59: #{tpu_custom_call.1} parent=39 // pred_region
          %s740 = ssub.s32 256, 256
          %741 = vsyncadd %s715, %s740
          %s742 = smul.addr %s32, 4
          %s743 = sadd.s32 %s33, %s742
          %s744 = smul.addr %s743, 64
          %s745 = scalar_lea.hbm %s6, %s744
          %s746 = sshll.u32 %s718, 4
          %s747 = int_to_ptr.vmem [resolvable:$true] %s746
          %752 = dma.vmem_to_hbm [thread:$0]  %s747, 256, %s745, %s715, 64, 64, 4
        $region60: #{tpu_custom_call.1} parent=39 // pred_fallthru
          _
      $region40: #{tpu_custom_call.1} parent=5 // pred_fallthru
        _
      %p753 = scmp.le.s32.totalorder 2, %s23
      // Predicated region
      $region61: #{tpu_custom_call.1} parent=5 // pred_check
        %p754 = pneg %p753
      $region62: #{tpu_custom_call.1} parent=5 // pred_check_branch
        %756 = sbr.rel (%p754) target = $region64
      $region63: #{tpu_custom_call.1} parent=5 // pred_region
        %s757 = ssub.s32 %s23, 2
        // Predicated region
        $region65: #{tpu_custom_call.1} parent=63 // pred_check
          %p758 = pneg %p188
        $region66: #{tpu_custom_call.1} parent=63 // pred_check_branch
          %760 = sbr.rel (%p758) target = $region68
        $region67: #{tpu_custom_call.1} parent=63 // pred_region
          %s761 = sand.u32 %s173, 1
          %s762 = scalar_lea.sflag [#allocation4], %s761
          %s763 = sand.u32 %s173, 1
          %s764 = smul.addr %s763, 16
          %s765 = scalar_lea.vmem [#allocation8], %s764
          %766 = dma.done %s762, 256
        $region68: #{tpu_custom_call.1} parent=63 // pred_fallthru
          _
        // Predicated region
        $region69: #{tpu_custom_call.1} parent=63 // pred_check
          %p767 = pneg %p216
        $region70: #{tpu_custom_call.1} parent=63 // pred_check_branch
          %769 = sbr.rel (%p767) target = $region72
        $region71: #{tpu_custom_call.1} parent=63 // pred_region
          %s770 = sand.u32 %s201, 1
          %s771 = scalar_lea.sflag [#allocation10], %s770
          %s772 = sand.u32 %s201, 1
          %s773 = smul.addr %s772, 16
          %s774 = scalar_lea.vmem [#allocation9], %s773
          %775 = dma.done %s771, 256
        $region72: #{tpu_custom_call.1} parent=63 // pred_fallthru
          _
      $region64: #{tpu_custom_call.1} parent=5 // pred_fallthru
        _
    $region6: #{tpu_custom_call.1} parent=1 // loop_footer
      %s27 = sadd.s32 1, %s23
    $region7: #{tpu_custom_call.1} parent=1 // loop_footer_branch
      %22 = sbr.rel target = $region3
    $region8: #{tpu_custom_call.1} parent=1 // loop_exit
      _
    %776 = vsyncpa [#allocation3], 1
    %s777 = scalar_lea.sflag [#allocation3], 1
    %778 = vsyncpa %s777, 1
    %779 = vsyncpa [#allocation6], 1
    %780 = vsyncpa [#allocation4], 1
    %s781 = scalar_lea.sflag [#allocation4], 1
    %782 = vsyncpa %s781, 1
    %783 = vsyncpa [#allocation10], 1
    %s784 = scalar_lea.sflag [#allocation10], 1
    %785 = vsyncpa %s784, 1

</llo_original>
